<compile_context>
chip_gen: v5e
topology: v5e:2x2
jax: 0.10.0
libtpu: 0.0.40
codegen_flags: <defaults>
</compile_context>

<pallas_src>
import functools
import math

import numpy as np
import jax
import jax.numpy as jnp
from jax.experimental import pallas as pl
from jax.experimental.pallas import tpu as pltpu


def _hnms_kernel(boxes_i_ref, boxes_j_ref, rank_i_ref, rank_j_ref,
                 keep_ref, stk_ref, *, num, alpha):
    """One (j-tile x i-tile) block of the pairwise suppression matrix.

    grid = (num_i_tiles [parallel], num_j_tiles [arbitrary]); rows j live on
    sublanes, columns i live on lanes; keep_ref is the resident per-i-tile
    accumulator across the j axis.
    """
    log_alpha = jnp.float32(math.log(alpha))
    two30 = jnp.float32(2.0 ** 30)

    def cell_keys(boxes_ref):
        # xyxy -> cxywh fused in-kernel (cheap (1, T) VPU work).
        x1 = boxes_ref[0:1, :]
        y1 = boxes_ref[1:2, :]
        x2 = boxes_ref[2:3, :]
        y2 = boxes_ref[3:4, :]
        cx = (x1 + x2) * 0.5
        cy = (y1 + y2) * 0.5
        w = x2 - x1
        h = y2 - y1
        # TODO(synk): jnp.log on non-positive w/h (degenerate boxes) yields -inf/NaN
        # keys; such boxes may collide arbitrarily with each other.
        logw = jnp.log(w) / log_alpha          # EUP
        logh = jnp.log(h) / log_alpha
        key_a, key_b = [], []
        for k in range(num):
            off = jnp.float32(k) / jnp.float32(num)
            # quantize log-size with step log(alpha)
            iw = jnp.round(logw + off)
            ih = jnp.round(logh + off)
            # representative (cell) width / height = alpha ** iw, alpha ** ih
            dw = jnp.exp(iw * log_alpha)
            dh = jnp.exp(ih * log_alpha)
            # TODO(synk): exact offset/scale scheme of the closed-source hnms.MultiHNMS
            # is not published; this follows the HNMS paper.
            ix = jnp.round(cx / dw + off)
            iy = jnp.round(cy / dh + off)
            # clamp before the float->int cast so off-scale boxes alias instead of UB
            iw_i = jnp.clip(iw, -two30, two30).astype(jnp.int32)
            ih_i = jnp.clip(ih, -two30, two30).astype(jnp.int32)
            ix_i = jnp.clip(ix, -two30, two30).astype(jnp.int32)
            iy_i = jnp.clip(iy, -two30, two30).astype(jnp.int32)
            # TODO(synk): 16-bit packing aliases if |iw|,|ih|,|ix|,|iy| >= 2**15.
            key_a.append((iw_i << 16) | (ih_i & 0xFFFF))
            key_b.append((ix_i << 16) | (iy_i & 0xFFFF))
        return key_a, key_b

    # ---- column (i / lane) side: stays in (1, TI) row layout -------------------
    ka_i, kb_i = cell_keys(boxes_i_ref)            # num x (1, TI) int32
    rank_i = rank_i_ref[...]                       # (1, TI) int32

    # ---- row (j / sublane) side: keys in row layout, ONE batched transpose -----
    ka_j, kb_j = cell_keys(boxes_j_ref)            # num x (1, TJ) int32
    stk_ref[0:1, :] = rank_j_ref[...]
    for k in range(num):
        stk_ref[1 + k:2 + k, :] = ka_j[k]
        stk_ref[1 + num + k:2 + num + k, :] = kb_j[k]
    # rows beyond 1+2*num are never consumed; their contents are irrelevant.
    stk_t = jnp.transpose(stk_ref[...])            # (TJ, 8m) single XLU transpose
    rank_jt = stk_t[:, 0:1]                        # (TJ, 1)
    ka_jt = [stk_t[:, 1 + k:2 + k] for k in range(num)]
    kb_jt = [stk_t[:, 1 + num + k:2 + num + k] for k in range(num)]

    # j dominates i  <=>  rank_j < rank_i  (rank encodes score-desc, index-asc order)
    dominates = rank_jt < rank_i                   # (TJ, TI)

    # OR the per-table collision matrices first, then a single AND + reduce.
    same_any = (ka_jt[0] == ka_i[0]) & (kb_jt[0] == kb_i[0])
    for k in range(1, num):
        same_any = same_any | ((ka_jt[k] == ka_i[k]) & (kb_jt[k] == kb_i[k]))

    supp = jnp.any(same_any & dominates, axis=0, keepdims=True)   # (1, TI), sublane reduce

    j = pl.program_id(1)

    @pl.when(j == 0)
    def _():
        keep_ref[...] = jnp.zeros_like(keep_ref)

    keep_ref[...] = keep_ref[...] | supp.astype(jnp.int32)

    @pl.when(j == pl.num_programs(1) - 1)
    def _():
        keep_ref[...] = 1 - keep_ref[...]          # suppressed -> keep


def _pick_tile(n_pad, target):
    """Largest multiple of 128 <= target that divides n_pad (n_pad % 128 == 0)."""
    t = min(target, n_pad)
    while n_pad % t:
        t -= 128
    return t


def multi_hnms_keep(boxes_xyxy_4n, scores_1n, *, num, alpha,
                    tile_i=512, tile_j=512):
    """keep[0, i] = 1 iff box i survives all `num` hash-NMS tables."""
    n = boxes_xyxy_4n.shape[1]
    n_pad = ((n + 127) // 128) * 128               # lane-dense layout

    if n_pad != n:
        pad = n_pad - n
        # Pad boxes are unit boxes at the origin with score -inf: their rank is
        # maximal so they can never suppress a real box; their own keep bits are
        # sliced off below.
        pad_boxes = jnp.concatenate(
            [jnp.zeros((2, pad), jnp.float32),         # x1, y1 = 0
             jnp.ones((2, pad), jnp.float32)], axis=0)  # x2, y2 = 1
        boxes_xyxy_4n = jnp.concatenate([boxes_xyxy_4n, pad_boxes], axis=1)
        scores_1n = jnp.concatenate(
            [scores_1n, jnp.full((1, pad), -jnp.inf, jnp.float32)], axis=1)

    # Strict total-order rank (0 = best): score descending, ties broken by lower
    # index.  Replaces the in-kernel (N,N) iota / score-compare `dominates`.
    order = jnp.argsort(-scores_1n[0], stable=True)
    rank = (jnp.zeros((n_pad,), jnp.int32)
            .at[order].set(jnp.arange(n_pad, dtype=jnp.int32))
            .reshape(1, n_pad))

    ti = _pick_tile(n_pad, tile_i)                 # lane (i / output) tile
    tj = _pick_tile(n_pad, tile_j)                 # sublane (j / reduction) tile
    grid = (n_pad // ti, n_pad // tj)
    rows_pad = ((1 + 2 * num + 7) // 8) * 8        # batched-transpose scratch rows

    # Scoped-VMEM sized from the actual per-tile temporaries, with headroom; safe
    # below physical VMEM on v5e/v6e/v7x.
    vmem_bytes = int(min(48 * 1024 * 1024,
                         max(16 * 1024 * 1024,
                             6 * ti * tj * 4 + 64 * (ti + tj) * 4)))

    kernel = functools.partial(_hnms_kernel, num=num, alpha=alpha)
    keep = pl.pallas_call(
        kernel,
        out_shape=jax.ShapeDtypeStruct((1, n_pad), jnp.int32),
        grid=grid,
        in_specs=[
            pl.BlockSpec((4, ti), lambda i, j: (0, i)),   # boxes: column (lane) view
            pl.BlockSpec((4, tj), lambda i, j: (0, j)),   # boxes: row view
            pl.BlockSpec((1, ti), lambda i, j: (0, i)),   # rank:  column view
            pl.BlockSpec((1, tj), lambda i, j: (0, j)),   # rank:  row view
        ],
        out_specs=pl.BlockSpec((1, ti), lambda i, j: (0, i)),
        scratch_shapes=[pltpu.VMEM((rows_pad, tj), jnp.int32)],
        compiler_params=pltpu.CompilerParams(
            dimension_semantics=("parallel", "arbitrary"),
            vmem_limit_bytes=vmem_bytes),
    )(boxes_xyxy_4n, boxes_xyxy_4n, rank, rank)
    return keep[:, :n]


def box_list_hnms(boxes_xyxy, scores, *, num=2, alpha=0.7, max_proposals=16):
    """Forward pass of BoxListHNMS. Returns (boxes_cxywh, final_keep_mask)."""
    boxes_xyxy = boxes_xyxy.astype(jnp.float32)
    scores = scores.astype(jnp.float32)

    # glue: boxlist.convert('cxywh') — needed for the returned boxlist; the kernel
    # itself consumes raw xyxy and fuses the conversion on the VPU.
    x1, y1, x2, y2 = jnp.split(boxes_xyxy, 4, axis=1)
    boxes_cxywh = jnp.concatenate(
        [(x1 + x2) * 0.5, (y1 + y2) * 0.5, x2 - x1, y2 - y1], axis=1)   # (N, 4)

    boxes_4n = jnp.transpose(boxes_xyxy)                    # (4, N) xyxy kernel layout
    scores_1n = scores.reshape(1, -1)                       # (1, N)

    keep = multi_hnms_keep(boxes_4n, scores_1n, num=num, alpha=alpha)[0] > 0  # (N,)

    # glue: if max_proposals > 0 and len(keep) > max_proposals:
    #           keep = keep[topk(scores[keep], max_proposals)]
    # expressed as a fixed-shape boolean mask (rank of kept boxes by score).
    if max_proposals > 0:
        masked = jnp.where(keep, scores, -jnp.inf)
        order = jnp.argsort(-masked)                        # kept first, score desc
        rnk = jnp.zeros_like(order).at[order].set(jnp.arange(order.shape[0]))
        keep = keep & (rnk < max_proposals)

    return boxes_cxywh, keep


if __name__ == "__main__":
    # nms_policy.NUM = 2, nms_policy.ALPHA = 0.7, max_proposals = 16, score_field = 'scores'
    NUM, ALPHA, MAX_PROPOSALS = 2, 0.7, 16
    N = 128

    key = jax.random.PRNGKey(0)
    k1, k2, k3 = jax.random.split(key, 3)
    centers = jax.random.uniform(k1, (N, 2), minval=32.0, maxval=480.0)
    sizes = jax.random.uniform(k2, (N, 2), minval=8.0, maxval=128.0)
    boxes_xyxy = jnp.concatenate([centers - sizes * 0.5, centers + sizes * 0.5], axis=1)
    scores = jax.random.uniform(k3, (N,), minval=0.0, maxval=1.0)

    boxes_cxywh, keep = box_list_hnms(
        boxes_xyxy, scores, num=NUM, alpha=ALPHA, max_proposals=MAX_PROPOSALS)
    jax.block_until_ready((boxes_cxywh, keep))

    # TODO(synk): boxlist[keep] returns a variable-length BoxList; realized here as a
    # boolean gather outside jit.
    keep_np = np.asarray(keep)
    kept_boxes = np.asarray(boxes_cxywh)[keep_np]       # cxywh, like the converted boxlist
    kept_scores = np.asarray(scores)[keep_np]
    assert kept_boxes.shape[0] == kept_scores.shape[0]
    assert kept_boxes.shape[0] <= MAX_PROPOSALS

    print("KERNEL_OK")
</pallas_src>

<mosaic_0001>
module attributes {stable_mosaic.version = 11 : i64} {
  func.func @_hnms_kernel(%arg0: i32, %arg1: i32, %arg2: memref<4x128xf32, #tpu.memory_space<vmem>>, %arg3: memref<4x128xf32, #tpu.memory_space<vmem>>, %arg4: memref<1x128xi32, #tpu.memory_space<vmem>>, %arg5: memref<1x128xi32, #tpu.memory_space<vmem>>, %arg6: memref<1x128xi32, #tpu.memory_space<vmem>>, %arg7: memref<8x128xi32, #tpu.memory_space<vmem>>) attributes {dimension_semantics = [#tpu.dimension_semantics<parallel>, #tpu.dimension_semantics<arbitrary>], iteration_bounds = array<i64: 1, 1>, scalar_prefetch = 0 : i64, scratch_operands = 1 : i64, tpu.core_type = #tpu.core_type<tc>, window_params = [{transform_indices = @transform_0, window_bounds = array<i64: 4, 128>}, {transform_indices = @transform_1, window_bounds = array<i64: 4, 128>}, {transform_indices = @transform_2, window_bounds = array<i64: 1, 128>}, {transform_indices = @transform_3, window_bounds = array<i64: 1, 128>}, {transform_indices = @transform_4, window_bounds = array<i64: 1, 128>}]} {
    %c0 = arith.constant 0 : index
    %c0_0 = arith.constant 0 : index
    %0 = vector.load %arg2[%c0, %c0_0] : memref<4x128xf32, #tpu.memory_space<vmem>>, vector<1x128xf32>
    %c1 = arith.constant 1 : index
    %c0_1 = arith.constant 0 : index
    %1 = vector.load %arg2[%c1, %c0_1] : memref<4x128xf32, #tpu.memory_space<vmem>>, vector<1x128xf32>
    %c2 = arith.constant 2 : index
    %c0_2 = arith.constant 0 : index
    %2 = vector.load %arg2[%c2, %c0_2] : memref<4x128xf32, #tpu.memory_space<vmem>>, vector<1x128xf32>
    %c3 = arith.constant 3 : index
    %c0_3 = arith.constant 0 : index
    %3 = vector.load %arg2[%c3, %c0_3] : memref<4x128xf32, #tpu.memory_space<vmem>>, vector<1x128xf32>
    %4 = arith.addf %0, %2 : vector<1x128xf32>
    %cst = arith.constant 5.000000e-01 : f32
    %5 = vector.broadcast %cst : f32 to vector<1x128xf32>
    %6 = arith.mulf %4, %5 : vector<1x128xf32>
    %7 = arith.addf %1, %3 : vector<1x128xf32>
    %cst_4 = arith.constant 5.000000e-01 : f32
    %8 = vector.broadcast %cst_4 : f32 to vector<1x128xf32>
    %9 = arith.mulf %7, %8 : vector<1x128xf32>
    %10 = arith.subf %2, %0 : vector<1x128xf32>
    %11 = arith.subf %3, %1 : vector<1x128xf32>
    %12 = math.log %10 : vector<1x128xf32>
    %cst_5 = arith.constant -0.356674939 : f32
    %13 = vector.broadcast %cst_5 : f32 to vector<1x128xf32>
    %14 = arith.divf %12, %13 : vector<1x128xf32>
    %15 = math.log %11 : vector<1x128xf32>
    %cst_6 = arith.constant -0.356674939 : f32
    %16 = vector.broadcast %cst_6 : f32 to vector<1x128xf32>
    %17 = arith.divf %15, %16 : vector<1x128xf32>
    %cst_7 = arith.constant 0.000000e+00 : f32
    %cst_8 = arith.constant 2.000000e+00 : f32
    %18 = arith.divf %cst_7, %cst_8 : f32
    %19 = vector.broadcast %18 : f32 to vector<1x128xf32>
    %20 = arith.addf %14, %19 : vector<1x128xf32>
    %21 = math.roundeven %20 : vector<1x128xf32>
    %22 = vector.broadcast %18 : f32 to vector<1x128xf32>
    %23 = arith.addf %17, %22 : vector<1x128xf32>
    %24 = math.roundeven %23 : vector<1x128xf32>
    %cst_9 = arith.constant -0.356674939 : f32
    %25 = vector.broadcast %cst_9 : f32 to vector<1x128xf32>
    %26 = arith.mulf %21, %25 : vector<1x128xf32>
    %27 = math.exp %26 : vector<1x128xf32>
    %cst_10 = arith.constant -0.356674939 : f32
    %28 = vector.broadcast %cst_10 : f32 to vector<1x128xf32>
    %29 = arith.mulf %24, %28 : vector<1x128xf32>
    %30 = math.exp %29 : vector<1x128xf32>
    %31 = arith.divf %6, %27 : vector<1x128xf32>
    %32 = vector.broadcast %18 : f32 to vector<1x128xf32>
    %33 = arith.addf %31, %32 : vector<1x128xf32>
    %34 = math.roundeven %33 : vector<1x128xf32>
    %35 = arith.divf %9, %30 : vector<1x128xf32>
    %36 = vector.broadcast %18 : f32 to vector<1x128xf32>
    %37 = arith.addf %35, %36 : vector<1x128xf32>
    %38 = math.roundeven %37 : vector<1x128xf32>
    %cst_11 = arith.constant 0.000000e+00 : f32
    %cst_12 = arith.constant 1.07374182E+9 : f32
    %39 = arith.subf %cst_11, %cst_12 : f32
    %cst_13 = arith.constant 1.07374182E+9 : f32
    %40 = vector.broadcast %39 : f32 to vector<1x128xf32>
    %41 = arith.maximumf %40, %21 : vector<1x128xf32>
    %42 = vector.broadcast %cst_13 : f32 to vector<1x128xf32>
    %43 = arith.minimumf %42, %41 : vector<1x128xf32>
    %44 = arith.fptosi %43 : vector<1x128xf32> to vector<1x128xi32>
    %cst_14 = arith.constant 0.000000e+00 : f32
    %cst_15 = arith.constant 1.07374182E+9 : f32
    %45 = arith.subf %cst_14, %cst_15 : f32
    %cst_16 = arith.constant 1.07374182E+9 : f32
    %46 = vector.broadcast %45 : f32 to vector<1x128xf32>
    %47 = arith.maximumf %46, %24 : vector<1x128xf32>
    %48 = vector.broadcast %cst_16 : f32 to vector<1x128xf32>
    %49 = arith.minimumf %48, %47 : vector<1x128xf32>
    %50 = arith.fptosi %49 : vector<1x128xf32> to vector<1x128xi32>
    %cst_17 = arith.constant 0.000000e+00 : f32
    %cst_18 = arith.constant 1.07374182E+9 : f32
    %51 = arith.subf %cst_17, %cst_18 : f32
    %cst_19 = arith.constant 1.07374182E+9 : f32
    %52 = vector.broadcast %51 : f32 to vector<1x128xf32>
    %53 = arith.maximumf %52, %34 : vector<1x128xf32>
    %54 = vector.broadcast %cst_19 : f32 to vector<1x128xf32>
    %55 = arith.minimumf %54, %53 : vector<1x128xf32>
    %56 = arith.fptosi %55 : vector<1x128xf32> to vector<1x128xi32>
    %cst_20 = arith.constant 0.000000e+00 : f32
    %cst_21 = arith.constant 1.07374182E+9 : f32
    %57 = arith.subf %cst_20, %cst_21 : f32
    %cst_22 = arith.constant 1.07374182E+9 : f32
    %58 = vector.broadcast %57 : f32 to vector<1x128xf32>
    %59 = arith.maximumf %58, %38 : vector<1x128xf32>
    %60 = vector.broadcast %cst_22 : f32 to vector<1x128xf32>
    %61 = arith.minimumf %60, %59 : vector<1x128xf32>
    %62 = arith.fptosi %61 : vector<1x128xf32> to vector<1x128xi32>
    %c16_i32 = arith.constant 16 : i32
    %63 = vector.broadcast %c16_i32 : i32 to vector<1x128xi32>
    %64 = arith.shli %44, %63 : vector<1x128xi32>
    %c65535_i32 = arith.constant 65535 : i32
    %65 = vector.broadcast %c65535_i32 : i32 to vector<1x128xi32>
    %66 = arith.andi %50, %65 : vector<1x128xi32>
    %67 = arith.ori %64, %66 : vector<1x128xi32>
    %c16_i32_23 = arith.constant 16 : i32
    %68 = vector.broadcast %c16_i32_23 : i32 to vector<1x128xi32>
    %69 = arith.shli %56, %68 : vector<1x128xi32>
    %c65535_i32_24 = arith.constant 65535 : i32
    %70 = vector.broadcast %c65535_i32_24 : i32 to vector<1x128xi32>
    %71 = arith.andi %62, %70 : vector<1x128xi32>
    %72 = arith.ori %69, %71 : vector<1x128xi32>
    %cst_25 = arith.constant 1.000000e+00 : f32
    %cst_26 = arith.constant 2.000000e+00 : f32
    %73 = arith.divf %cst_25, %cst_26 : f32
    %74 = vector.broadcast %73 : f32 to vector<1x128xf32>
    %75 = arith.addf %14, %74 : vector<1x128xf32>
    %76 = math.roundeven %75 : vector<1x128xf32>
    %77 = vector.broadcast %73 : f32 to vector<1x128xf32>
    %78 = arith.addf %17, %77 : vector<1x128xf32>
    %79 = math.roundeven %78 : vector<1x128xf32>
    %cst_27 = arith.constant -0.356674939 : f32
    %80 = vector.broadcast %cst_27 : f32 to vector<1x128xf32>
    %81 = arith.mulf %76, %80 : vector<1x128xf32>
    %82 = math.exp %81 : vector<1x128xf32>
    %cst_28 = arith.constant -0.356674939 : f32
    %83 = vector.broadcast %cst_28 : f32 to vector<1x128xf32>
    %84 = arith.mulf %79, %83 : vector<1x128xf32>
    %85 = math.exp %84 : vector<1x128xf32>
    %86 = arith.divf %6, %82 : vector<1x128xf32>
    %87 = vector.broadcast %73 : f32 to vector<1x128xf32>
    %88 = arith.addf %86, %87 : vector<1x128xf32>
    %89 = math.roundeven %88 : vector<1x128xf32>
    %90 = arith.divf %9, %85 : vector<1x128xf32>
    %91 = vector.broadcast %73 : f32 to vector<1x128xf32>
    %92 = arith.addf %90, %91 : vector<1x128xf32>
    %93 = math.roundeven %92 : vector<1x128xf32>
    %cst_29 = arith.constant 0.000000e+00 : f32
    %cst_30 = arith.constant 1.07374182E+9 : f32
    %94 = arith.subf %cst_29, %cst_30 : f32
    %cst_31 = arith.constant 1.07374182E+9 : f32
    %95 = vector.broadcast %94 : f32 to vector<1x128xf32>
    %96 = arith.maximumf %95, %76 : vector<1x128xf32>
    %97 = vector.broadcast %cst_31 : f32 to vector<1x128xf32>
    %98 = arith.minimumf %97, %96 : vector<1x128xf32>
    %99 = arith.fptosi %98 : vector<1x128xf32> to vector<1x128xi32>
    %cst_32 = arith.constant 0.000000e+00 : f32
    %cst_33 = arith.constant 1.07374182E+9 : f32
    %100 = arith.subf %cst_32, %cst_33 : f32
    %cst_34 = arith.constant 1.07374182E+9 : f32
    %101 = vector.broadcast %100 : f32 to vector<1x128xf32>
    %102 = arith.maximumf %101, %79 : vector<1x128xf32>
    %103 = vector.broadcast %cst_34 : f32 to vector<1x128xf32>
    %104 = arith.minimumf %103, %102 : vector<1x128xf32>
    %105 = arith.fptosi %104 : vector<1x128xf32> to vector<1x128xi32>
    %cst_35 = arith.constant 0.000000e+00 : f32
    %cst_36 = arith.constant 1.07374182E+9 : f32
    %106 = arith.subf %cst_35, %cst_36 : f32
    %cst_37 = arith.constant 1.07374182E+9 : f32
    %107 = vector.broadcast %106 : f32 to vector<1x128xf32>
    %108 = arith.maximumf %107, %89 : vector<1x128xf32>
    %109 = vector.broadcast %cst_37 : f32 to vector<1x128xf32>
    %110 = arith.minimumf %109, %108 : vector<1x128xf32>
    %111 = arith.fptosi %110 : vector<1x128xf32> to vector<1x128xi32>
    %cst_38 = arith.constant 0.000000e+00 : f32
    %cst_39 = arith.constant 1.07374182E+9 : f32
    %112 = arith.subf %cst_38, %cst_39 : f32
    %cst_40 = arith.constant 1.07374182E+9 : f32
    %113 = vector.broadcast %112 : f32 to vector<1x128xf32>
    %114 = arith.maximumf %113, %93 : vector<1x128xf32>
    %115 = vector.broadcast %cst_40 : f32 to vector<1x128xf32>
    %116 = arith.minimumf %115, %114 : vector<1x128xf32>
    %117 = arith.fptosi %116 : vector<1x128xf32> to vector<1x128xi32>
    %c16_i32_41 = arith.constant 16 : i32
    %118 = vector.broadcast %c16_i32_41 : i32 to vector<1x128xi32>
    %119 = arith.shli %99, %118 : vector<1x128xi32>
    %c65535_i32_42 = arith.constant 65535 : i32
    %120 = vector.broadcast %c65535_i32_42 : i32 to vector<1x128xi32>
    %121 = arith.andi %105, %120 : vector<1x128xi32>
    %122 = arith.ori %119, %121 : vector<1x128xi32>
    %c16_i32_43 = arith.constant 16 : i32
    %123 = vector.broadcast %c16_i32_43 : i32 to vector<1x128xi32>
    %124 = arith.shli %111, %123 : vector<1x128xi32>
    %c65535_i32_44 = arith.constant 65535 : i32
    %125 = vector.broadcast %c65535_i32_44 : i32 to vector<1x128xi32>
    %126 = arith.andi %117, %125 : vector<1x128xi32>
    %127 = arith.ori %124, %126 : vector<1x128xi32>
    %c0_45 = arith.constant 0 : index
    %c0_46 = arith.constant 0 : index
    %128 = vector.load %arg4[%c0_45, %c0_46] : memref<1x128xi32, #tpu.memory_space<vmem>>, vector<1x128xi32>
    %c0_47 = arith.constant 0 : index
    %c0_48 = arith.constant 0 : index
    %129 = vector.load %arg3[%c0_47, %c0_48] : memref<4x128xf32, #tpu.memory_space<vmem>>, vector<1x128xf32>
    %c1_49 = arith.constant 1 : index
    %c0_50 = arith.constant 0 : index
    %130 = vector.load %arg3[%c1_49, %c0_50] : memref<4x128xf32, #tpu.memory_space<vmem>>, vector<1x128xf32>
    %c2_51 = arith.constant 2 : index
    %c0_52 = arith.constant 0 : index
    %131 = vector.load %arg3[%c2_51, %c0_52] : memref<4x128xf32, #tpu.memory_space<vmem>>, vector<1x128xf32>
    %c3_53 = arith.constant 3 : index
    %c0_54 = arith.constant 0 : index
    %132 = vector.load %arg3[%c3_53, %c0_54] : memref<4x128xf32, #tpu.memory_space<vmem>>, vector<1x128xf32>
    %133 = arith.addf %129, %131 : vector<1x128xf32>
    %cst_55 = arith.constant 5.000000e-01 : f32
    %134 = vector.broadcast %cst_55 : f32 to vector<1x128xf32>
    %135 = arith.mulf %133, %134 : vector<1x128xf32>
    %136 = arith.addf %130, %132 : vector<1x128xf32>
    %cst_56 = arith.constant 5.000000e-01 : f32
    %137 = vector.broadcast %cst_56 : f32 to vector<1x128xf32>
    %138 = arith.mulf %136, %137 : vector<1x128xf32>
    %139 = arith.subf %131, %129 : vector<1x128xf32>
    %140 = arith.subf %132, %130 : vector<1x128xf32>
    %141 = math.log %139 : vector<1x128xf32>
    %cst_57 = arith.constant -0.356674939 : f32
    %142 = vector.broadcast %cst_57 : f32 to vector<1x128xf32>
    %143 = arith.divf %141, %142 : vector<1x128xf32>
    %144 = math.log %140 : vector<1x128xf32>
    %cst_58 = arith.constant -0.356674939 : f32
    %145 = vector.broadcast %cst_58 : f32 to vector<1x128xf32>
    %146 = arith.divf %144, %145 : vector<1x128xf32>
    %cst_59 = arith.constant 0.000000e+00 : f32
    %cst_60 = arith.constant 2.000000e+00 : f32
    %147 = arith.divf %cst_59, %cst_60 : f32
    %148 = vector.broadcast %147 : f32 to vector<1x128xf32>
    %149 = arith.addf %143, %148 : vector<1x128xf32>
    %150 = math.roundeven %149 : vector<1x128xf32>
    %151 = vector.broadcast %147 : f32 to vector<1x128xf32>
    %152 = arith.addf %146, %151 : vector<1x128xf32>
    %153 = math.roundeven %152 : vector<1x128xf32>
    %cst_61 = arith.constant -0.356674939 : f32
    %154 = vector.broadcast %cst_61 : f32 to vector<1x128xf32>
    %155 = arith.mulf %150, %154 : vector<1x128xf32>
    %156 = math.exp %155 : vector<1x128xf32>
    %cst_62 = arith.constant -0.356674939 : f32
    %157 = vector.broadcast %cst_62 : f32 to vector<1x128xf32>
    %158 = arith.mulf %153, %157 : vector<1x128xf32>
    %159 = math.exp %158 : vector<1x128xf32>
    %160 = arith.divf %135, %156 : vector<1x128xf32>
    %161 = vector.broadcast %147 : f32 to vector<1x128xf32>
    %162 = arith.addf %160, %161 : vector<1x128xf32>
    %163 = math.roundeven %162 : vector<1x128xf32>
    %164 = arith.divf %138, %159 : vector<1x128xf32>
    %165 = vector.broadcast %147 : f32 to vector<1x128xf32>
    %166 = arith.addf %164, %165 : vector<1x128xf32>
    %167 = math.roundeven %166 : vector<1x128xf32>
    %cst_63 = arith.constant 0.000000e+00 : f32
    %cst_64 = arith.constant 1.07374182E+9 : f32
    %168 = arith.subf %cst_63, %cst_64 : f32
    %cst_65 = arith.constant 1.07374182E+9 : f32
    %169 = vector.broadcast %168 : f32 to vector<1x128xf32>
    %170 = arith.maximumf %169, %150 : vector<1x128xf32>
    %171 = vector.broadcast %cst_65 : f32 to vector<1x128xf32>
    %172 = arith.minimumf %171, %170 : vector<1x128xf32>
    %173 = arith.fptosi %172 : vector<1x128xf32> to vector<1x128xi32>
    %cst_66 = arith.constant 0.000000e+00 : f32
    %cst_67 = arith.constant 1.07374182E+9 : f32
    %174 = arith.subf %cst_66, %cst_67 : f32
    %cst_68 = arith.constant 1.07374182E+9 : f32
    %175 = vector.broadcast %174 : f32 to vector<1x128xf32>
    %176 = arith.maximumf %175, %153 : vector<1x128xf32>
    %177 = vector.broadcast %cst_68 : f32 to vector<1x128xf32>
    %178 = arith.minimumf %177, %176 : vector<1x128xf32>
    %179 = arith.fptosi %178 : vector<1x128xf32> to vector<1x128xi32>
    %cst_69 = arith.constant 0.000000e+00 : f32
    %cst_70 = arith.constant 1.07374182E+9 : f32
    %180 = arith.subf %cst_69, %cst_70 : f32
    %cst_71 = arith.constant 1.07374182E+9 : f32
    %181 = vector.broadcast %180 : f32 to vector<1x128xf32>
    %182 = arith.maximumf %181, %163 : vector<1x128xf32>
    %183 = vector.broadcast %cst_71 : f32 to vector<1x128xf32>
    %184 = arith.minimumf %183, %182 : vector<1x128xf32>
    %185 = arith.fptosi %184 : vector<1x128xf32> to vector<1x128xi32>
    %cst_72 = arith.constant 0.000000e+00 : f32
    %cst_73 = arith.constant 1.07374182E+9 : f32
    %186 = arith.subf %cst_72, %cst_73 : f32
    %cst_74 = arith.constant 1.07374182E+9 : f32
    %187 = vector.broadcast %186 : f32 to vector<1x128xf32>
    %188 = arith.maximumf %187, %167 : vector<1x128xf32>
    %189 = vector.broadcast %cst_74 : f32 to vector<1x128xf32>
    %190 = arith.minimumf %189, %188 : vector<1x128xf32>
    %191 = arith.fptosi %190 : vector<1x128xf32> to vector<1x128xi32>
    %c16_i32_75 = arith.constant 16 : i32
    %192 = vector.broadcast %c16_i32_75 : i32 to vector<1x128xi32>
    %193 = arith.shli %173, %192 : vector<1x128xi32>
    %c65535_i32_76 = arith.constant 65535 : i32
    %194 = vector.broadcast %c65535_i32_76 : i32 to vector<1x128xi32>
    %195 = arith.andi %179, %194 : vector<1x128xi32>
    %196 = arith.ori %193, %195 : vector<1x128xi32>
    %c16_i32_77 = arith.constant 16 : i32
    %197 = vector.broadcast %c16_i32_77 : i32 to vector<1x128xi32>
    %198 = arith.shli %185, %197 : vector<1x128xi32>
    %c65535_i32_78 = arith.constant 65535 : i32
    %199 = vector.broadcast %c65535_i32_78 : i32 to vector<1x128xi32>
    %200 = arith.andi %191, %199 : vector<1x128xi32>
    %201 = arith.ori %198, %200 : vector<1x128xi32>
    %cst_79 = arith.constant 1.000000e+00 : f32
    %cst_80 = arith.constant 2.000000e+00 : f32
    %202 = arith.divf %cst_79, %cst_80 : f32
    %203 = vector.broadcast %202 : f32 to vector<1x128xf32>
    %204 = arith.addf %143, %203 : vector<1x128xf32>
    %205 = math.roundeven %204 : vector<1x128xf32>
    %206 = vector.broadcast %202 : f32 to vector<1x128xf32>
    %207 = arith.addf %146, %206 : vector<1x128xf32>
    %208 = math.roundeven %207 : vector<1x128xf32>
    %cst_81 = arith.constant -0.356674939 : f32
    %209 = vector.broadcast %cst_81 : f32 to vector<1x128xf32>
    %210 = arith.mulf %205, %209 : vector<1x128xf32>
    %211 = math.exp %210 : vector<1x128xf32>
    %cst_82 = arith.constant -0.356674939 : f32
    %212 = vector.broadcast %cst_82 : f32 to vector<1x128xf32>
    %213 = arith.mulf %208, %212 : vector<1x128xf32>
    %214 = math.exp %213 : vector<1x128xf32>
    %215 = arith.divf %135, %211 : vector<1x128xf32>
    %216 = vector.broadcast %202 : f32 to vector<1x128xf32>
    %217 = arith.addf %215, %216 : vector<1x128xf32>
    %218 = math.roundeven %217 : vector<1x128xf32>
    %219 = arith.divf %138, %214 : vector<1x128xf32>
    %220 = vector.broadcast %202 : f32 to vector<1x128xf32>
    %221 = arith.addf %219, %220 : vector<1x128xf32>
    %222 = math.roundeven %221 : vector<1x128xf32>
    %cst_83 = arith.constant 0.000000e+00 : f32
    %cst_84 = arith.constant 1.07374182E+9 : f32
    %223 = arith.subf %cst_83, %cst_84 : f32
    %cst_85 = arith.constant 1.07374182E+9 : f32
    %224 = vector.broadcast %223 : f32 to vector<1x128xf32>
    %225 = arith.maximumf %224, %205 : vector<1x128xf32>
    %226 = vector.broadcast %cst_85 : f32 to vector<1x128xf32>
    %227 = arith.minimumf %226, %225 : vector<1x128xf32>
    %228 = arith.fptosi %227 : vector<1x128xf32> to vector<1x128xi32>
    %cst_86 = arith.constant 0.000000e+00 : f32
    %cst_87 = arith.constant 1.07374182E+9 : f32
    %229 = arith.subf %cst_86, %cst_87 : f32
    %cst_88 = arith.constant 1.07374182E+9 : f32
    %230 = vector.broadcast %229 : f32 to vector<1x128xf32>
    %231 = arith.maximumf %230, %208 : vector<1x128xf32>
    %232 = vector.broadcast %cst_88 : f32 to vector<1x128xf32>
    %233 = arith.minimumf %232, %231 : vector<1x128xf32>
    %234 = arith.fptosi %233 : vector<1x128xf32> to vector<1x128xi32>
    %cst_89 = arith.constant 0.000000e+00 : f32
    %cst_90 = arith.constant 1.07374182E+9 : f32
    %235 = arith.subf %cst_89, %cst_90 : f32
    %cst_91 = arith.constant 1.07374182E+9 : f32
    %236 = vector.broadcast %235 : f32 to vector<1x128xf32>
    %237 = arith.maximumf %236, %218 : vector<1x128xf32>
    %238 = vector.broadcast %cst_91 : f32 to vector<1x128xf32>
    %239 = arith.minimumf %238, %237 : vector<1x128xf32>
    %240 = arith.fptosi %239 : vector<1x128xf32> to vector<1x128xi32>
    %cst_92 = arith.constant 0.000000e+00 : f32
    %cst_93 = arith.constant 1.07374182E+9 : f32
    %241 = arith.subf %cst_92, %cst_93 : f32
    %cst_94 = arith.constant 1.07374182E+9 : f32
    %242 = vector.broadcast %241 : f32 to vector<1x128xf32>
    %243 = arith.maximumf %242, %222 : vector<1x128xf32>
    %244 = vector.broadcast %cst_94 : f32 to vector<1x128xf32>
    %245 = arith.minimumf %244, %243 : vector<1x128xf32>
    %246 = arith.fptosi %245 : vector<1x128xf32> to vector<1x128xi32>
    %c16_i32_95 = arith.constant 16 : i32
    %247 = vector.broadcast %c16_i32_95 : i32 to vector<1x128xi32>
    %248 = arith.shli %228, %247 : vector<1x128xi32>
    %c65535_i32_96 = arith.constant 65535 : i32
    %249 = vector.broadcast %c65535_i32_96 : i32 to vector<1x128xi32>
    %250 = arith.andi %234, %249 : vector<1x128xi32>
    %251 = arith.ori %248, %250 : vector<1x128xi32>
    %c16_i32_97 = arith.constant 16 : i32
    %252 = vector.broadcast %c16_i32_97 : i32 to vector<1x128xi32>
    %253 = arith.shli %240, %252 : vector<1x128xi32>
    %c65535_i32_98 = arith.constant 65535 : i32
    %254 = vector.broadcast %c65535_i32_98 : i32 to vector<1x128xi32>
    %255 = arith.andi %246, %254 : vector<1x128xi32>
    %256 = arith.ori %253, %255 : vector<1x128xi32>
    %c0_99 = arith.constant 0 : index
    %c0_100 = arith.constant 0 : index
    %257 = vector.load %arg5[%c0_99, %c0_100] : memref<1x128xi32, #tpu.memory_space<vmem>>, vector<1x128xi32>
    %c0_101 = arith.constant 0 : index
    %c0_102 = arith.constant 0 : index
    %258 = vector.load %arg7[%c0_101, %c0_102] : memref<8x128xi32, #tpu.memory_space<vmem>>, vector<1x128xi32>
    tpu.vector_store %arg7[%c0_101, %c0_102], %257 {strides = array<i32>} : memref<8x128xi32, #tpu.memory_space<vmem>>, vector<1x128xi32>,
    %c1_103 = arith.constant 1 : index
    %c0_104 = arith.constant 0 : index
    %259 = vector.load %arg7[%c1_103, %c0_104] : memref<8x128xi32, #tpu.memory_space<vmem>>, vector<1x128xi32>
    tpu.vector_store %arg7[%c1_103, %c0_104], %196 {strides = array<i32>} : memref<8x128xi32, #tpu.memory_space<vmem>>, vector<1x128xi32>,
    %c3_105 = arith.constant 3 : index
    %c0_106 = arith.constant 0 : index
    %260 = vector.load %arg7[%c3_105, %c0_106] : memref<8x128xi32, #tpu.memory_space<vmem>>, vector<1x128xi32>
    tpu.vector_store %arg7[%c3_105, %c0_106], %201 {strides = array<i32>} : memref<8x128xi32, #tpu.memory_space<vmem>>, vector<1x128xi32>,
    %c2_107 = arith.constant 2 : index
    %c0_108 = arith.constant 0 : index
    %261 = vector.load %arg7[%c2_107, %c0_108] : memref<8x128xi32, #tpu.memory_space<vmem>>, vector<1x128xi32>
    tpu.vector_store %arg7[%c2_107, %c0_108], %251 {strides = array<i32>} : memref<8x128xi32, #tpu.memory_space<vmem>>, vector<1x128xi32>,
    %c4 = arith.constant 4 : index
    %c0_109 = arith.constant 0 : index
    %262 = vector.load %arg7[%c4, %c0_109] : memref<8x128xi32, #tpu.memory_space<vmem>>, vector<1x128xi32>
    tpu.vector_store %arg7[%c4, %c0_109], %256 {strides = array<i32>} : memref<8x128xi32, #tpu.memory_space<vmem>>, vector<1x128xi32>,
    %c0_110 = arith.constant 0 : index
    %c0_111 = arith.constant 0 : index
    %263 = vector.load %arg7[%c0_110, %c0_111] : memref<8x128xi32, #tpu.memory_space<vmem>>, vector<8x128xi32>
    %264 = tpu.transpose %263, [1, 0] : vector<8x128xi32> -> vector<128x8xi32>
    %265 = vector.extract_strided_slice %264 {offsets = [0, 0], sizes = [128, 1], strides = [1, 1]} : vector<128x8xi32> to vector<128x1xi32>
    %266 = vector.extract_strided_slice %264 {offsets = [0, 1], sizes = [128, 1], strides = [1, 1]} : vector<128x8xi32> to vector<128x1xi32>
    %267 = vector.extract_strided_slice %264 {offsets = [0, 2], sizes = [128, 1], strides = [1, 1]} : vector<128x8xi32> to vector<128x1xi32>
    %268 = vector.extract_strided_slice %264 {offsets = [0, 3], sizes = [128, 1], strides = [1, 1]} : vector<128x8xi32> to vector<128x1xi32>
    %269 = vector.extract_strided_slice %264 {offsets = [0, 4], sizes = [128, 1], strides = [1, 1]} : vector<128x8xi32> to vector<128x1xi32>
    %270 = vector.broadcast %265 : vector<128x1xi32> to vector<128x128xi32>
    %271 = vector.broadcast %128 : vector<1x128xi32> to vector<128x128xi32>
    %272 = arith.cmpi slt, %270, %271 : vector<128x128xi32>
    %273 = vector.broadcast %266 : vector<128x1xi32> to vector<128x128xi32>
    %274 = vector.broadcast %67 : vector<1x128xi32> to vector<128x128xi32>
    %275 = arith.cmpi eq, %273, %274 : vector<128x128xi32>
    %276 = vector.broadcast %268 : vector<128x1xi32> to vector<128x128xi32>
    %277 = vector.broadcast %72 : vector<1x128xi32> to vector<128x128xi32>
    %278 = arith.cmpi eq, %276, %277 : vector<128x128xi32>
    %279 = arith.andi %275, %278 : vector<128x128xi1>
    %280 = vector.broadcast %267 : vector<128x1xi32> to vector<128x128xi32>
    %281 = vector.broadcast %122 : vector<1x128xi32> to vector<128x128xi32>
    %282 = arith.cmpi eq, %280, %281 : vector<128x128xi32>
    %283 = vector.broadcast %269 : vector<128x1xi32> to vector<128x128xi32>
    %284 = vector.broadcast %127 : vector<1x128xi32> to vector<128x128xi32>
    %285 = arith.cmpi eq, %283, %284 : vector<128x128xi32>
    %286 = arith.andi %282, %285 : vector<128x128xi1>
    %287 = arith.ori %279, %286 : vector<128x128xi1>
    %288 = arith.andi %287, %272 : vector<128x128xi1>
    %cst_112 = arith.constant 1.000000e+00 : f32
    %cst_113 = arith.constant 0.000000e+00 : f32
    %289 = vector.broadcast %cst_112 : f32 to vector<128x128xf32>
    %290 = vector.broadcast %cst_113 : f32 to vector<128x128xf32>
    %291 = arith.select %288, %289, %290 : vector<128x128xi1>, vector<128x128xf32>
    %cst_114 = arith.constant dense<0xFF800000> : vector<128xf32>
    %292 = vector.multi_reduction <maximumf>, %291, %cst_114 [0] : vector<128x128xf32> to vector<128xf32>
    %cst_115 = arith.constant 0.000000e+00 : f32
    %293 = vector.broadcast %cst_115 : f32 to vector<128xf32>
    %294 = arith.cmpf ogt, %292, %293 : vector<128xf32>
    %295 = vector.shape_cast %294 : vector<128xi1> to vector<1x128xi1>
    %c0_i32 = arith.constant 0 : i32
    %296 = arith.cmpi eq, %arg1, %c0_i32 : i32
    %297 = arith.extui %296 : i1 to i32
    %c0_i32_116 = arith.constant 0 : i32
    %298 = arith.cmpi ne, %297, %c0_i32_116 : i32
    scf.if %298 {
      %c0_i32_123 = arith.constant 0 : i32
      %306 = vector.broadcast %c0_i32_123 : i32 to vector<1x128xi32>
      %c0_124 = arith.constant 0 : index
      %c0_125 = arith.constant 0 : index
      %307 = vector.load %arg6[%c0_124, %c0_125] : memref<1x128xi32, #tpu.memory_space<vmem>>, vector<1x128xi32>
      tpu.vector_store %arg6[%c0_124, %c0_125], %306 {strides = array<i32>} : memref<1x128xi32, #tpu.memory_space<vmem>>, vector<1x128xi32>,
    } else {
    }
    %c0_117 = arith.constant 0 : index
    %c0_118 = arith.constant 0 : index
    %299 = vector.load %arg6[%c0_117, %c0_118] : memref<1x128xi32, #tpu.memory_space<vmem>>, vector<1x128xi32>
    %300 = arith.extui %295 : vector<1x128xi1> to vector<1x128xi32>
    %301 = arith.ori %299, %300 : vector<1x128xi32>
    %c0_119 = arith.constant 0 : index
    %c0_120 = arith.constant 0 : index
    %302 = vector.load %arg6[%c0_119, %c0_120] : memref<1x128xi32, #tpu.memory_space<vmem>>, vector<1x128xi32>
    tpu.vector_store %arg6[%c0_119, %c0_120], %301 {strides = array<i32>} : memref<1x128xi32, #tpu.memory_space<vmem>>, vector<1x128xi32>,
    %c0_i32_121 = arith.constant 0 : i32
    %303 = arith.cmpi eq, %arg1, %c0_i32_121 : i32
    %304 = arith.extui %303 : i1 to i32
    %c0_i32_122 = arith.constant 0 : i32
    %305 = arith.cmpi ne, %304, %c0_i32_122 : i32
    scf.if %305 {
      %c0_123 = arith.constant 0 : index
      %c0_124 = arith.constant 0 : index
      %306 = vector.load %arg6[%c0_123, %c0_124] : memref<1x128xi32, #tpu.memory_space<vmem>>, vector<1x128xi32>
      %c1_i32 = arith.constant 1 : i32
      %307 = vector.broadcast %c1_i32 : i32 to vector<1x128xi32>
      %308 = arith.subi %307, %306 : vector<1x128xi32>
      %c0_125 = arith.constant 0 : index
      %c0_126 = arith.constant 0 : index
      %309 = vector.load %arg6[%c0_125, %c0_126] : memref<1x128xi32, #tpu.memory_space<vmem>>, vector<1x128xi32>
      tpu.vector_store %arg6[%c0_125, %c0_126], %308 {strides = array<i32>} : memref<1x128xi32, #tpu.memory_space<vmem>>, vector<1x128xi32>,
    } else {
    }
    return
  }
  func.func @transform_0(%arg0: i32, %arg1: i32) -> (i32, i32) {
    %c0_i32 = arith.constant 0 : i32
    %c0_i32_0 = arith.constant 0 : i32
    return %c0_i32, %arg0 : i32, i32
  }
  func.func @transform_1(%arg0: i32, %arg1: i32) -> (i32, i32) {
    %c0_i32 = arith.constant 0 : i32
    %c0_i32_0 = arith.constant 0 : i32
    return %c0_i32, %arg1 : i32, i32
  }
  func.func @transform_2(%arg0: i32, %arg1: i32) -> (i32, i32) {
    %c0_i32 = arith.constant 0 : i32
    %c0_i32_0 = arith.constant 0 : i32
    return %c0_i32, %arg0 : i32, i32
  }
  func.func @transform_3(%arg0: i32, %arg1: i32) -> (i32, i32) {
    %c0_i32 = arith.constant 0 : i32
    %c0_i32_0 = arith.constant 0 : i32
    return %c0_i32, %arg1 : i32, i32
  }
  func.func @transform_4(%arg0: i32, %arg1: i32) -> (i32, i32) {
    %c0_i32 = arith.constant 0 : i32
    %c0_i32_0 = arith.constant 0 : i32
    return %c0_i32, %arg0 : i32, i32
  }
}

</mosaic_0001>

<llo_original>
// kernel: tpu_custom_call.1
$region0: #{tpu_custom_call.1}
  #allocation0 [shape = 'u32[]', space=smem, size = 0x4, offset = 0x4, fixed_abs, tag = 'smem constant byte address 0x4 - core index']
  #allocation1 [shape = 'u32[72,128]{1,0:T(1,128)}', space=vmem, size = 0x9000, scoped, tag = 'internal scratch']
  #allocation2 [shape = 's32[8,128]{1,0:T(8,128)}', space=vmem, size = 0x1000, scoped, tag = 'scratch operand']
  %s0 = inlined_call_operand.hbm [shape: f32[4,128], index: 0, kind: input, shape index: {}]
  %s1 = inlined_call_operand.hbm [shape: f32[4,128], index: 1, kind: input, shape index: {}]
  %s2 = inlined_call_operand.vmem [shape: s32[1,128], index: 2, kind: input, shape index: {}]
  %s3 = inlined_call_operand.vmem [shape: s32[1,128], index: 3, kind: input, shape index: {}]
  %s4 = inlined_call_operand.hbm [shape: s32[1,128], index: 4, kind: output, shape index: {}]
  %s5 = sld [smem:[#allocation0]]
  $region42: #{tpu_custom_call.1} parent=0
    _
  %s7 = ssub.s32 1, %s5
  %s8 = scalar_select 0, %s7, %s5
  $region1: #{tpu_custom_call.1} parent=0
    #allocation3 [shape = 'u8[2048]{0}', space=vmem, size = 0x800, scoped, tag = 'input window, operand 0, single buffered']
    #allocation4 [shape = 's32[1]{0}', space=sflag, size = 0x4, scoped, tag = 'scoped memory for tpu_custom_call.1']
    #allocation5 [shape = 's32[1]{0}', space=sflag, size = 0x4, scoped, tag = 'scoped memory for tpu_custom_call.1']
    #allocation6 [shape = 'u8[2048]{0}', space=vmem, size = 0x800, scoped, tag = 'input window, operand 1, single buffered']
    #allocation7 [shape = 's32[1]{0}', space=sflag, size = 0x4, scoped, tag = 'scoped memory for tpu_custom_call.1']
    #allocation8 [shape = 'u8[512]{0}', space=vmem, size = 0x400, scoped, tag = 'output window, operand 0, single buffered']
    %9 = vsyncpa [#allocation4], 0
    %10 = vsyncpa [#allocation7], 0
    %11 = vsyncpa [#allocation5], 0
    // Predicated region
    $region2: #{tpu_custom_call.1} parent=1 // pred_check
      _
    $region3: #{tpu_custom_call.1} parent=1 // pred_check_branch
      %13 = sbr.rel (0) target = $region5
    $region4: #{tpu_custom_call.1} parent=1 // pred_region
      %15 = vsyncadd [#allocation4], 0
      %s17 = sshll.u32 %s0, 4
      %s18 = int_to_ptr.hbm [resolvable:$true] %s17
      %s19 = sshll.u32 [#allocation3], 4
      %s20 = int_to_ptr.vmem [resolvable:$true] %s19
      %22 = dma.hbm_to_vmem [thread:$0]  %s18, 64, %s20, [#allocation4]
    $region5: #{tpu_custom_call.1} parent=1 // pred_fallthru
      _
    // Predicated region
    $region6: #{tpu_custom_call.1} parent=1 // pred_check
      _
    $region7: #{tpu_custom_call.1} parent=1 // pred_check_branch
      %24 = sbr.rel (0) target = $region9
    $region8: #{tpu_custom_call.1} parent=1 // pred_region
      %26 = vsyncadd [#allocation7], 0
      %s28 = sshll.u32 %s1, 4
      %s29 = int_to_ptr.hbm [resolvable:$true] %s28
      %s30 = sshll.u32 [#allocation6], 4
      %s31 = int_to_ptr.vmem [resolvable:$true] %s30
      %33 = dma.hbm_to_vmem [thread:$0]  %s29, 64, %s31, [#allocation7]
    $region9: #{tpu_custom_call.1} parent=1 // pred_fallthru
      _
    // Predicated region
    $region10: #{tpu_custom_call.1} parent=1 // pred_check
      _
    $region11: #{tpu_custom_call.1} parent=1 // pred_check_branch
      %35 = sbr.rel (0) target = $region13
    $region12: #{tpu_custom_call.1} parent=1 // pred_region
      _
    $region13: #{tpu_custom_call.1} parent=1 // pred_fallthru
      _
    // Predicated region
    $region14: #{tpu_custom_call.1} parent=1 // pred_check
      _
    $region15: #{tpu_custom_call.1} parent=1 // pred_check_branch
      %37 = sbr.rel (0) target = $region17
    $region16: #{tpu_custom_call.1} parent=1 // pred_region
      _
    $region17: #{tpu_custom_call.1} parent=1 // pred_fallthru
      _
    // Predicated region
    $region18: #{tpu_custom_call.1} parent=1 // pred_check
      _
    $region19: #{tpu_custom_call.1} parent=1 // pred_check_branch
      %39 = sbr.rel (0) target = $region21
    $region20: #{tpu_custom_call.1} parent=1 // pred_region
      %41 = dma.done [#allocation4], 64
    $region21: #{tpu_custom_call.1} parent=1 // pred_fallthru
      _
    // Predicated region
    $region22: #{tpu_custom_call.1} parent=1 // pred_check
      _
    $region23: #{tpu_custom_call.1} parent=1 // pred_check_branch
      %43 = sbr.rel (0) target = $region25
    $region24: #{tpu_custom_call.1} parent=1 // pred_region
      %45 = dma.done [#allocation7], 64
    $region25: #{tpu_custom_call.1} parent=1 // pred_fallthru
      _
    %v46 = vld [vmem:[#allocation3] sm:$0x1]
    %v47 = vld [vmem:[#allocation3 + $0x1] sm:$0x1]
    %v48 = vld [vmem:[#allocation3 + $0x2] sm:$0x1]
    %v49 = vld [vmem:[#allocation3 + $0x3] sm:$0x1]
    %v50 = vadd.f32 %v46, %v48
    %v51 = vmul.f32 %v50, 0.5
    %v52 = vadd.f32 %v47, %v49
    %v53 = vmul.f32 %v52, 0.5
    %v54 = vsub.f32 %v48, %v46
    %v55 = vsub.f32 %v49, %v47
    %v56 = vlog2.pop %v54
    %v57 = vmul.f32 %v56, 0.6931472
    %v58 = vrcp.pop -0.35667494
    %v59 = vmul.f32 -0.35667494, %v58
    %v60 = vsub.f32 1.0, %v59
    %v61 = vmul.f32 %v58, %v60
    %v62 = vadd.f32 %v58, %v61
    %vm63 = vweird.f32 %v58
    %v64 = vsel %vm63, %v58, %v62
    %v65 = vmul.f32 %v57, %v64
    %v66 = vlog2.pop %v55
    %v67 = vmul.f32 %v66, 0.6931472
    %v68 = vmul.f32 %v67, %v64
    %v69 = vadd.f32 %v65, 0.0
    %v70 = vround.ne.pseudo %v69
    %v71 = vadd.f32 %v68, 0.0
    %v72 = vround.ne.pseudo %v71
    %v73 = vmul.f32 %v70, -0.35667494
    %v74 = vmul.f32 %v73, 1.442695
    %v75 = vpow.pop %v74
    %v76 = vmul.f32 %v72, -0.35667494
    %v77 = vmul.f32 %v76, 1.442695
    %v78 = vpow.pop %v77
    %v79 = vrcp.pop %v75
    %v80 = vmul.f32 %v75, %v79
    %v81 = vsub.f32 1.0, %v80
    %v82 = vmul.f32 %v79, %v81
    %v83 = vadd.f32 %v79, %v82
    %vm84 = vweird.f32 %v75
    %vm85 = vweird.f32 %v79
    %vm86 = vmor %vm84, %vm85
    %v87 = vsel %vm86, %v79, %v83
    %v88 = vand.u32 2147483647, %v75
    %vm89 = vcmp.eq.f32.partialorder %v88, 8.507059e+37
    %v90 = vand.u32 %v75, 2147483648
    %v91 = vor.u32 1.1754944e-38, %v90
    %v92 = vsel %vm89, %v91, %v87
    %v93 = vmul.f32 %v51, %v92
    %v94 = vadd.f32 %v93, 0.0
    %v95 = vround.ne.pseudo %v94
    %v96 = vrcp.pop %v78
    %v97 = vmul.f32 %v78, %v96
    %v98 = vsub.f32 1.0, %v97
    %v99 = vmul.f32 %v96, %v98
    %v100 = vadd.f32 %v96, %v99
    %vm101 = vweird.f32 %v78
    %vm102 = vweird.f32 %v96
    %vm103 = vmor %vm101, %vm102
    %v104 = vsel %vm103, %v96, %v100
    %v105 = vand.u32 2147483647, %v78
    %vm106 = vcmp.eq.f32.partialorder %v105, 8.507059e+37
    %v107 = vand.u32 %v78, 2147483648
    %v108 = vor.u32 1.1754944e-38, %v107
    %v109 = vsel %vm106, %v108, %v104
    %v110 = vmul.f32 %v53, %v109
    %v111 = vadd.f32 %v110, 0.0
    %v112 = vround.ne.pseudo %v111
    %v113 = vmax.f32 %v70, -1.0737418e+09
    %v114 = vmin.f32 %v113, 1.0737418e+09
    %v115 = vcvt.f32.s32.to.zero.pseudo %v114
    %v116 = vmax.f32 %v72, -1.0737418e+09
    %v117 = vmin.f32 %v116, 1.0737418e+09
    %v118 = vcvt.f32.s32.to.zero.pseudo %v117
    %v119 = vmax.f32 %v95, -1.0737418e+09
    %v120 = vmin.f32 %v119, 1.0737418e+09
    %v121 = vcvt.f32.s32.to.zero.pseudo %v120
    %v122 = vmax.f32 %v112, -1.0737418e+09
    %v123 = vmin.f32 %v122, 1.0737418e+09
    %v124 = vcvt.f32.s32.to.zero.pseudo %v123
    %v125 = vshll.u32 %v115, 16
    %v126 = vand.u32 %v118, 65535
    %v127 = vor.u32 %v125, %v126
    %v128 = vshll.u32 %v121, 16
    %v129 = vand.u32 %v124, 65535
    %v130 = vor.u32 %v128, %v129
    %v131 = vadd.f32 %v65, 0.5
    %v132 = vround.ne.pseudo %v131
    %v133 = vadd.f32 %v68, 0.5
    %v134 = vround.ne.pseudo %v133
    %v135 = vmul.f32 %v132, -0.35667494
    %v136 = vmul.f32 %v135, 1.442695
    %v137 = vpow.pop %v136
    %v138 = vmul.f32 %v134, -0.35667494
    %v139 = vmul.f32 %v138, 1.442695
    %v140 = vpow.pop %v139
    %v141 = vrcp.pop %v137
    %v142 = vmul.f32 %v137, %v141
    %v143 = vsub.f32 1.0, %v142
    %v144 = vmul.f32 %v141, %v143
    %v145 = vadd.f32 %v141, %v144
    %vm146 = vweird.f32 %v137
    %vm147 = vweird.f32 %v141
    %vm148 = vmor %vm146, %vm147
    %v149 = vsel %vm148, %v141, %v145
    %v150 = vand.u32 2147483647, %v137
    %vm151 = vcmp.eq.f32.partialorder %v150, 8.507059e+37
    %v152 = vand.u32 %v137, 2147483648
    %v153 = vor.u32 1.1754944e-38, %v152
    %v154 = vsel %vm151, %v153, %v149
    %v155 = vmul.f32 %v51, %v154
    %v156 = vadd.f32 %v155, 0.5
    %v157 = vround.ne.pseudo %v156
    %v158 = vrcp.pop %v140
    %v159 = vmul.f32 %v140, %v158
    %v160 = vsub.f32 1.0, %v159
    %v161 = vmul.f32 %v158, %v160
    %v162 = vadd.f32 %v158, %v161
    %vm163 = vweird.f32 %v140
    %vm164 = vweird.f32 %v158
    %vm165 = vmor %vm163, %vm164
    %v166 = vsel %vm165, %v158, %v162
    %v167 = vand.u32 2147483647, %v140
    %vm168 = vcmp.eq.f32.partialorder %v167, 8.507059e+37
    %v169 = vand.u32 %v140, 2147483648
    %v170 = vor.u32 1.1754944e-38, %v169
    %v171 = vsel %vm168, %v170, %v166
    %v172 = vmul.f32 %v53, %v171
    %v173 = vadd.f32 %v172, 0.5
    %v174 = vround.ne.pseudo %v173
    %v175 = vmax.f32 %v132, -1.0737418e+09
    %v176 = vmin.f32 %v175, 1.0737418e+09
    %v177 = vcvt.f32.s32.to.zero.pseudo %v176
    %v178 = vmax.f32 %v134, -1.0737418e+09
    %v179 = vmin.f32 %v178, 1.0737418e+09
    %v180 = vcvt.f32.s32.to.zero.pseudo %v179
    %v181 = vmax.f32 %v157, -1.0737418e+09
    %v182 = vmin.f32 %v181, 1.0737418e+09
    %v183 = vcvt.f32.s32.to.zero.pseudo %v182
    %v184 = vmax.f32 %v174, -1.0737418e+09
    %v185 = vmin.f32 %v184, 1.0737418e+09
    %v186 = vcvt.f32.s32.to.zero.pseudo %v185
    %v187 = vshll.u32 %v177, 16
    %v188 = vand.u32 %v180, 65535
    %v189 = vor.u32 %v187, %v188
    %v190 = vshll.u32 %v183, 16
    %v191 = vand.u32 %v186, 65535
    %v192 = vor.u32 %v190, %v191
    %v193 = vld [vmem:[%s2] sm:$0x1]
    %v194 = vld [vmem:[#allocation6] sm:$0x1]
    %v195 = vld [vmem:[#allocation6 + $0x1] sm:$0x1]
    %v196 = vld [vmem:[#allocation6 + $0x2] sm:$0x1]
    %v197 = vld [vmem:[#allocation6 + $0x3] sm:$0x1]
    %v198 = vadd.f32 %v194, %v196
    %v199 = vmul.f32 %v198, 0.5
    %v200 = vadd.f32 %v195, %v197
    %v201 = vmul.f32 %v200, 0.5
    %v202 = vsub.f32 %v196, %v194
    %v203 = vsub.f32 %v197, %v195
    %v204 = vlog2.pop %v202
    %v205 = vmul.f32 %v204, 0.6931472
    %v206 = vmul.f32 %v205, %v64
    %v207 = vlog2.pop %v203
    %v208 = vmul.f32 %v207, 0.6931472
    %v209 = vmul.f32 %v208, %v64
    %v210 = vadd.f32 %v206, 0.0
    %v211 = vround.ne.pseudo %v210
    %v212 = vadd.f32 %v209, 0.0
    %v213 = vround.ne.pseudo %v212
    %v214 = vmul.f32 %v211, -0.35667494
    %v215 = vmul.f32 %v214, 1.442695
    %v216 = vpow.pop %v215
    %v217 = vmul.f32 %v213, -0.35667494
    %v218 = vmul.f32 %v217, 1.442695
    %v219 = vpow.pop %v218
    %v220 = vrcp.pop %v216
    %v221 = vmul.f32 %v216, %v220
    %v222 = vsub.f32 1.0, %v221
    %v223 = vmul.f32 %v220, %v222
    %v224 = vadd.f32 %v220, %v223
    %vm225 = vweird.f32 %v216
    %vm226 = vweird.f32 %v220
    %vm227 = vmor %vm225, %vm226
    %v228 = vsel %vm227, %v220, %v224
    %v229 = vand.u32 2147483647, %v216
    %vm230 = vcmp.eq.f32.partialorder %v229, 8.507059e+37
    %v231 = vand.u32 %v216, 2147483648
    %v232 = vor.u32 1.1754944e-38, %v231
    %v233 = vsel %vm230, %v232, %v228
    %v234 = vmul.f32 %v199, %v233
    %v235 = vadd.f32 %v234, 0.0
    %v236 = vround.ne.pseudo %v235
    %v237 = vrcp.pop %v219
    %v238 = vmul.f32 %v219, %v237
    %v239 = vsub.f32 1.0, %v238
    %v240 = vmul.f32 %v237, %v239
    %v241 = vadd.f32 %v237, %v240
    %vm242 = vweird.f32 %v219
    %vm243 = vweird.f32 %v237
    %vm244 = vmor %vm242, %vm243
    %v245 = vsel %vm244, %v237, %v241
    %v246 = vand.u32 2147483647, %v219
    %vm247 = vcmp.eq.f32.partialorder %v246, 8.507059e+37
    %v248 = vand.u32 %v219, 2147483648
    %v249 = vor.u32 1.1754944e-38, %v248
    %v250 = vsel %vm247, %v249, %v245
    %v251 = vmul.f32 %v201, %v250
    %v252 = vadd.f32 %v251, 0.0
    %v253 = vround.ne.pseudo %v252
    %v254 = vmax.f32 %v211, -1.0737418e+09
    %v255 = vmin.f32 %v254, 1.0737418e+09
    %v256 = vcvt.f32.s32.to.zero.pseudo %v255
    %v257 = vmax.f32 %v213, -1.0737418e+09
    %v258 = vmin.f32 %v257, 1.0737418e+09
    %v259 = vcvt.f32.s32.to.zero.pseudo %v258
    %v260 = vmax.f32 %v236, -1.0737418e+09
    %v261 = vmin.f32 %v260, 1.0737418e+09
    %v262 = vcvt.f32.s32.to.zero.pseudo %v261
    %v263 = vmax.f32 %v253, -1.0737418e+09
    %v264 = vmin.f32 %v263, 1.0737418e+09
    %v265 = vcvt.f32.s32.to.zero.pseudo %v264
    %v266 = vshll.u32 %v256, 16
    %v267 = vand.u32 %v259, 65535
    %v268 = vor.u32 %v266, %v267
    %v269 = vshll.u32 %v262, 16
    %v270 = vand.u32 %v265, 65535
    %v271 = vor.u32 %v269, %v270
    %v272 = vadd.f32 %v206, 0.5
    %v273 = vround.ne.pseudo %v272
    %v274 = vadd.f32 %v209, 0.5
    %v275 = vround.ne.pseudo %v274
    %v276 = vmul.f32 %v273, -0.35667494
    %v277 = vmul.f32 %v276, 1.442695
    %v278 = vpow.pop %v277
    %v279 = vmul.f32 %v275, -0.35667494
    %v280 = vmul.f32 %v279, 1.442695
    %v281 = vpow.pop %v280
    %v282 = vrcp.pop %v278
    %v283 = vmul.f32 %v278, %v282
    %v284 = vsub.f32 1.0, %v283
    %v285 = vmul.f32 %v282, %v284
    %v286 = vadd.f32 %v282, %v285
    %vm287 = vweird.f32 %v278
    %vm288 = vweird.f32 %v282
    %vm289 = vmor %vm287, %vm288
    %v290 = vsel %vm289, %v282, %v286
    %v291 = vand.u32 2147483647, %v278
    %vm292 = vcmp.eq.f32.partialorder %v291, 8.507059e+37
    %v293 = vand.u32 %v278, 2147483648
    %v294 = vor.u32 1.1754944e-38, %v293
    %v295 = vsel %vm292, %v294, %v290
    %v296 = vmul.f32 %v199, %v295
    %v297 = vadd.f32 %v296, 0.5
    %v298 = vround.ne.pseudo %v297
    %v299 = vrcp.pop %v281
    %v300 = vmul.f32 %v281, %v299
    %v301 = vsub.f32 1.0, %v300
    %v302 = vmul.f32 %v299, %v301
    %v303 = vadd.f32 %v299, %v302
    %vm304 = vweird.f32 %v281
    %vm305 = vweird.f32 %v299
    %vm306 = vmor %vm304, %vm305
    %v307 = vsel %vm306, %v299, %v303
    %v308 = vand.u32 2147483647, %v281
    %vm309 = vcmp.eq.f32.partialorder %v308, 8.507059e+37
    %v310 = vand.u32 %v281, 2147483648
    %v311 = vor.u32 1.1754944e-38, %v310
    %v312 = vsel %vm309, %v311, %v307
    %v313 = vmul.f32 %v201, %v312
    %v314 = vadd.f32 %v313, 0.5
    %v315 = vround.ne.pseudo %v314
    %v316 = vmax.f32 %v273, -1.0737418e+09
    %v317 = vmin.f32 %v316, 1.0737418e+09
    %v318 = vcvt.f32.s32.to.zero.pseudo %v317
    %v319 = vmax.f32 %v275, -1.0737418e+09
    %v320 = vmin.f32 %v319, 1.0737418e+09
    %v321 = vcvt.f32.s32.to.zero.pseudo %v320
    %v322 = vmax.f32 %v298, -1.0737418e+09
    %v323 = vmin.f32 %v322, 1.0737418e+09
    %v324 = vcvt.f32.s32.to.zero.pseudo %v323
    %v325 = vmax.f32 %v315, -1.0737418e+09
    %v326 = vmin.f32 %v325, 1.0737418e+09
    %v327 = vcvt.f32.s32.to.zero.pseudo %v326
    %v328 = vshll.u32 %v318, 16
    %v329 = vand.u32 %v321, 65535
    %v330 = vor.u32 %v328, %v329
    %v331 = vshll.u32 %v324, 16
    %v332 = vand.u32 %v327, 65535
    %v333 = vor.u32 %v331, %v332
    %v334 = vld [vmem:[%s3] sm:$0x1]
    %335 = vst [vmem:[#allocation2] sm:$0x1] %v334
    %336 = vst [vmem:[#allocation2 + $0x1] sm:$0x1] %v268
    %337 = vst [vmem:[#allocation2 + $0x3] sm:$0x1] %v271
    %338 = vst [vmem:[#allocation2 + $0x2] sm:$0x1] %v330
    %339 = vst [vmem:[#allocation2 + $0x4] sm:$0x1] %v333
    %v340 = vld [vmem:[#allocation2] sm:$0xff]
    %341 = vxpose.xlu0.b32.start [1/16] %v340, 128
    %342 = vxpose.xlu0.b32.cont [2/16] 0, 128
    %343 = vxpose.xlu0.b32.cont [3/16] 0, 128
    %344 = vxpose.xlu0.b32.cont [4/16] 0, 128
    %345 = vxpose.xlu0.b32.cont [5/16] 0, 128
    %346 = vxpose.xlu0.b32.cont [6/16] 0, 128
    %347 = vxpose.xlu0.b32.cont [7/16] 0, 128
    %348 = vxpose.xlu0.b32.cont [8/16] 0, 128
    %349 = vxpose.xlu0.b32.cont [9/16] 0, 128
    %350 = vxpose.xlu0.b32.cont [10/16] 0, 128
    %351 = vxpose.xlu0.b32.cont [11/16] 0, 128
    %352 = vxpose.xlu0.b32.cont [12/16] 0, 128
    %353 = vxpose.xlu0.b32.cont [13/16] 0, 128
    %354 = vxpose.xlu0.b32.cont [14/16] 0, 128
    %355 = vxpose.xlu0.b32.cont [15/16] 0, 128
    %356 = vxpose.xlu0.b32.end [16/16] 0, 128
    %v357 = vpop.trf.xlu0
    %v358 = vpop.trf.xlu0
    %v359 = vpop.trf.xlu0
    %v360 = vpop.trf.xlu0
    %v361 = vpop.trf.xlu0
    %v362 = vpop.trf.xlu0
    %v363 = vpop.trf.xlu0
    %v364 = vpop.trf.xlu0
    %v365 = vpop.trf.xlu0
    %v366 = vpop.trf.xlu0
    %v367 = vpop.trf.xlu0
    %v368 = vpop.trf.xlu0
    %v369 = vpop.trf.xlu0
    %v370 = vpop.trf.xlu0
    %v371 = vpop.trf.xlu0
    %v372 = vpop.trf.xlu0
    %373 = vset.pattern.permute.xlu0 0
    %374 = vperm.xlu0 %373, %v357
    %v375 = vpop.permute.xlu0 %374
    %376 = vset.pattern.permute.xlu0 0
    %377 = vperm.xlu0 %376, %v358
    %v378 = vpop.permute.xlu0 %377
    %379 = vset.pattern.permute.xlu0 0
    %380 = vperm.xlu0 %379, %v359
    %v381 = vpop.permute.xlu0 %380
    %382 = vset.pattern.permute.xlu0 0
    %383 = vperm.xlu0 %382, %v360
    %v384 = vpop.permute.xlu0 %383
    %385 = vset.pattern.permute.xlu0 0
    %386 = vperm.xlu0 %385, %v361
    %v387 = vpop.permute.xlu0 %386
    %388 = vset.pattern.permute.xlu0 0
    %389 = vperm.xlu0 %388, %v362
    %v390 = vpop.permute.xlu0 %389
    %391 = vset.pattern.permute.xlu0 0
    %392 = vperm.xlu0 %391, %v363
    %v393 = vpop.permute.xlu0 %392
    %394 = vset.pattern.permute.xlu0 0
    %395 = vperm.xlu0 %394, %v364
    %v396 = vpop.permute.xlu0 %395
    %397 = vset.pattern.permute.xlu0 0
    %398 = vperm.xlu0 %397, %v365
    %v399 = vpop.permute.xlu0 %398
    %400 = vset.pattern.permute.xlu0 0
    %401 = vperm.xlu0 %400, %v366
    %v402 = vpop.permute.xlu0 %401
    %403 = vset.pattern.permute.xlu0 0
    %404 = vperm.xlu0 %403, %v367
    %v405 = vpop.permute.xlu0 %404
    %406 = vset.pattern.permute.xlu0 0
    %407 = vperm.xlu0 %406, %v368
    %v408 = vpop.permute.xlu0 %407
    %409 = vset.pattern.permute.xlu0 0
    %410 = vperm.xlu0 %409, %v369
    %v411 = vpop.permute.xlu0 %410
    %412 = vset.pattern.permute.xlu0 0
    %413 = vperm.xlu0 %412, %v370
    %v414 = vpop.permute.xlu0 %413
    %415 = vset.pattern.permute.xlu0 0
    %416 = vperm.xlu0 %415, %v371
    %v417 = vpop.permute.xlu0 %416
    %418 = vset.pattern.permute.xlu0 0
    %419 = vperm.xlu0 %418, %v372
    %v420 = vpop.permute.xlu0 %419
    %v421 = vperm.slane %v193, 0
    %vm422 = vcmp.lt.s32.totalorder %v375, %v421
    %vm423 = vcmp.lt.s32.totalorder %v378, %v421
    %vm424 = vcmp.lt.s32.totalorder %v381, %v421
    %vm425 = vcmp.lt.s32.totalorder %v384, %v421
    %vm426 = vcmp.lt.s32.totalorder %v387, %v421
    %vm427 = vcmp.lt.s32.totalorder %v390, %v421
    %vm428 = vcmp.lt.s32.totalorder %v393, %v421
    %vm429 = vcmp.lt.s32.totalorder %v396, %v421
    %vm430 = vcmp.lt.s32.totalorder %v399, %v421
    %vm431 = vcmp.lt.s32.totalorder %v402, %v421
    %vm432 = vcmp.lt.s32.totalorder %v405, %v421
    %vm433 = vcmp.lt.s32.totalorder %v408, %v421
    %vm434 = vcmp.lt.s32.totalorder %v411, %v421
    %vm435 = vcmp.lt.s32.totalorder %v414, %v421
    %vm436 = vcmp.lt.s32.totalorder %v417, %v421
    %vm437 = vcmp.lt.s32.totalorder %v420, %v421
    %438 = vset.pattern.permute.xlu0 1
    %439 = vperm.xlu0 %438, %v357
    %v440 = vpop.permute.xlu0 %439
    %441 = vset.pattern.permute.xlu0 1
    %442 = vperm.xlu0 %441, %v358
    %v443 = vpop.permute.xlu0 %442
    %444 = vset.pattern.permute.xlu0 1
    %445 = vperm.xlu0 %444, %v359
    %v446 = vpop.permute.xlu0 %445
    %447 = vset.pattern.permute.xlu0 1
    %448 = vperm.xlu0 %447, %v360
    %v449 = vpop.permute.xlu0 %448
    %450 = vset.pattern.permute.xlu0 1
    %451 = vperm.xlu0 %450, %v361
    %v452 = vpop.permute.xlu0 %451
    %453 = vset.pattern.permute.xlu0 1
    %454 = vperm.xlu0 %453, %v362
    %v455 = vpop.permute.xlu0 %454
    %456 = vset.pattern.permute.xlu0 1
    %457 = vperm.xlu0 %456, %v363
    %v458 = vpop.permute.xlu0 %457
    %459 = vset.pattern.permute.xlu0 1
    %460 = vperm.xlu0 %459, %v364
    %v461 = vpop.permute.xlu0 %460
    %462 = vset.pattern.permute.xlu0 1
    %463 = vperm.xlu0 %462, %v365
    %v464 = vpop.permute.xlu0 %463
    %465 = vset.pattern.permute.xlu0 1
    %466 = vperm.xlu0 %465, %v366
    %v467 = vpop.permute.xlu0 %466
    %468 = vset.pattern.permute.xlu0 1
    %469 = vperm.xlu0 %468, %v367
    %v470 = vpop.permute.xlu0 %469
    %471 = vset.pattern.permute.xlu0 1
    %472 = vperm.xlu0 %471, %v368
    %v473 = vpop.permute.xlu0 %472
    %474 = vset.pattern.permute.xlu0 1
    %475 = vperm.xlu0 %474, %v369
    %v476 = vpop.permute.xlu0 %475
    %477 = vset.pattern.permute.xlu0 1
    %478 = vperm.xlu0 %477, %v370
    %v479 = vpop.permute.xlu0 %478
    %480 = vset.pattern.permute.xlu0 1
    %481 = vperm.xlu0 %480, %v371
    %v482 = vpop.permute.xlu0 %481
    %483 = vset.pattern.permute.xlu0 1
    %484 = vperm.xlu0 %483, %v372
    %v485 = vpop.permute.xlu0 %484
    %v486 = vperm.slane %v127, 0
    %vm487 = vcmp.eq.s32.totalorder %v440, %v486
    %vm488 = vcmp.eq.s32.totalorder %v443, %v486
    %vm489 = vcmp.eq.s32.totalorder %v446, %v486
    %vm490 = vcmp.eq.s32.totalorder %v449, %v486
    %vm491 = vcmp.eq.s32.totalorder %v452, %v486
    %vm492 = vcmp.eq.s32.totalorder %v455, %v486
    %vm493 = vcmp.eq.s32.totalorder %v458, %v486
    %vm494 = vcmp.eq.s32.totalorder %v461, %v486
    %vm495 = vcmp.eq.s32.totalorder %v464, %v486
    %vm496 = vcmp.eq.s32.totalorder %v467, %v486
    %vm497 = vcmp.eq.s32.totalorder %v470, %v486
    %vm498 = vcmp.eq.s32.totalorder %v473, %v486
    %vm499 = vcmp.eq.s32.totalorder %v476, %v486
    %vm500 = vcmp.eq.s32.totalorder %v479, %v486
    %vm501 = vcmp.eq.s32.totalorder %v482, %v486
    %vm502 = vcmp.eq.s32.totalorder %v485, %v486
    %503 = vset.pattern.permute.xlu0 3
    %504 = vperm.xlu0 %503, %v357
    %v505 = vpop.permute.xlu0 %504
    %506 = vset.pattern.permute.xlu0 3
    %507 = vperm.xlu0 %506, %v358
    %v508 = vpop.permute.xlu0 %507
    %509 = vset.pattern.permute.xlu0 3
    %510 = vperm.xlu0 %509, %v359
    %v511 = vpop.permute.xlu0 %510
    %512 = vset.pattern.permute.xlu0 3
    %513 = vperm.xlu0 %512, %v360
    %v514 = vpop.permute.xlu0 %513
    %515 = vset.pattern.permute.xlu0 3
    %516 = vperm.xlu0 %515, %v361
    %v517 = vpop.permute.xlu0 %516
    %518 = vset.pattern.permute.xlu0 3
    %519 = vperm.xlu0 %518, %v362
    %v520 = vpop.permute.xlu0 %519
    %521 = vset.pattern.permute.xlu0 3
    %522 = vperm.xlu0 %521, %v363
    %v523 = vpop.permute.xlu0 %522
    %524 = vset.pattern.permute.xlu0 3
    %525 = vperm.xlu0 %524, %v364
    %v526 = vpop.permute.xlu0 %525
    %527 = vset.pattern.permute.xlu0 3
    %528 = vperm.xlu0 %527, %v365
    %v529 = vpop.permute.xlu0 %528
    %530 = vset.pattern.permute.xlu0 3
    %531 = vperm.xlu0 %530, %v366
    %v532 = vpop.permute.xlu0 %531
    %533 = vset.pattern.permute.xlu0 3
    %534 = vperm.xlu0 %533, %v367
    %v535 = vpop.permute.xlu0 %534
    %536 = vset.pattern.permute.xlu0 3
    %537 = vperm.xlu0 %536, %v368
    %v538 = vpop.permute.xlu0 %537
    %539 = vset.pattern.permute.xlu0 3
    %540 = vperm.xlu0 %539, %v369
    %v541 = vpop.permute.xlu0 %540
    %542 = vset.pattern.permute.xlu0 3
    %543 = vperm.xlu0 %542, %v370
    %v544 = vpop.permute.xlu0 %543
    %545 = vset.pattern.permute.xlu0 3
    %546 = vperm.xlu0 %545, %v371
    %v547 = vpop.permute.xlu0 %546
    %548 = vset.pattern.permute.xlu0 3
    %549 = vperm.xlu0 %548, %v372
    %v550 = vpop.permute.xlu0 %549
    %v551 = vperm.slane %v130, 0
    %vm552 = vcmp.eq.s32.totalorder %v505, %v551
    %vm553 = vcmp.eq.s32.totalorder %v508, %v551
    %vm554 = vcmp.eq.s32.totalorder %v511, %v551
    %vm555 = vcmp.eq.s32.totalorder %v514, %v551
    %vm556 = vcmp.eq.s32.totalorder %v517, %v551
    %vm557 = vcmp.eq.s32.totalorder %v520, %v551
    %vm558 = vcmp.eq.s32.totalorder %v523, %v551
    %vm559 = vcmp.eq.s32.totalorder %v526, %v551
    %vm560 = vcmp.eq.s32.totalorder %v529, %v551
    %vm561 = vcmp.eq.s32.totalorder %v532, %v551
    %vm562 = vcmp.eq.s32.totalorder %v535, %v551
    %vm563 = vcmp.eq.s32.totalorder %v538, %v551
    %vm564 = vcmp.eq.s32.totalorder %v541, %v551
    %vm565 = vcmp.eq.s32.totalorder %v544, %v551
    %vm566 = vcmp.eq.s32.totalorder %v547, %v551
    %vm567 = vcmp.eq.s32.totalorder %v550, %v551
    %vm568 = vmand %vm487, %vm552
    %vm569 = vmand %vm488, %vm553
    %vm570 = vmand %vm489, %vm554
    %vm571 = vmand %vm490, %vm555
    %vm572 = vmand %vm491, %vm556
    %vm573 = vmand %vm492, %vm557
    %vm574 = vmand %vm493, %vm558
    %vm575 = vmand %vm494, %vm559
    %vm576 = vmand %vm495, %vm560
    %vm577 = vmand %vm496, %vm561
    %vm578 = vmand %vm497, %vm562
    %vm579 = vmand %vm498, %vm563
    %vm580 = vmand %vm499, %vm564
    %vm581 = vmand %vm500, %vm565
    %vm582 = vmand %vm501, %vm566
    %vm583 = vmand %vm502, %vm567
    %584 = vset.pattern.permute.xlu0 2
    %585 = vperm.xlu0 %584, %v357
    %v586 = vpop.permute.xlu0 %585
    %587 = vset.pattern.permute.xlu0 2
    %588 = vperm.xlu0 %587, %v358
    %v589 = vpop.permute.xlu0 %588
    %590 = vset.pattern.permute.xlu0 2
    %591 = vperm.xlu0 %590, %v359
    %v592 = vpop.permute.xlu0 %591
    %593 = vset.pattern.permute.xlu0 2
    %594 = vperm.xlu0 %593, %v360
    %v595 = vpop.permute.xlu0 %594
    %596 = vset.pattern.permute.xlu0 2
    %597 = vperm.xlu0 %596, %v361
    %v598 = vpop.permute.xlu0 %597
    %599 = vset.pattern.permute.xlu0 2
    %600 = vperm.xlu0 %599, %v362
    %v601 = vpop.permute.xlu0 %600
    %602 = vset.pattern.permute.xlu0 2
    %603 = vperm.xlu0 %602, %v363
    %v604 = vpop.permute.xlu0 %603
    %605 = vset.pattern.permute.xlu0 2
    %606 = vperm.xlu0 %605, %v364
    %v607 = vpop.permute.xlu0 %606
    %608 = vset.pattern.permute.xlu0 2
    %609 = vperm.xlu0 %608, %v365
    %v610 = vpop.permute.xlu0 %609
    %611 = vset.pattern.permute.xlu0 2
    %612 = vperm.xlu0 %611, %v366
    %v613 = vpop.permute.xlu0 %612
    %614 = vset.pattern.permute.xlu0 2
    %615 = vperm.xlu0 %614, %v367
    %v616 = vpop.permute.xlu0 %615
    %617 = vset.pattern.permute.xlu0 2
    %618 = vperm.xlu0 %617, %v368
    %v619 = vpop.permute.xlu0 %618
    %620 = vset.pattern.permute.xlu0 2
    %621 = vperm.xlu0 %620, %v369
    %v622 = vpop.permute.xlu0 %621
    %623 = vset.pattern.permute.xlu0 2
    %624 = vperm.xlu0 %623, %v370
    %v625 = vpop.permute.xlu0 %624
    %626 = vset.pattern.permute.xlu0 2
    %627 = vperm.xlu0 %626, %v371
    %v628 = vpop.permute.xlu0 %627
    %629 = vset.pattern.permute.xlu0 2
    %630 = vperm.xlu0 %629, %v372
    %v631 = vpop.permute.xlu0 %630
    %v632 = vperm.slane %v189, 0
    %vm633 = vcmp.eq.s32.totalorder %v586, %v632
    %vm634 = vcmp.eq.s32.totalorder %v589, %v632
    %vm635 = vcmp.eq.s32.totalorder %v592, %v632
    %vm636 = vcmp.eq.s32.totalorder %v595, %v632
    %vm637 = vcmp.eq.s32.totalorder %v598, %v632
    %vm638 = vcmp.eq.s32.totalorder %v601, %v632
    %vm639 = vcmp.eq.s32.totalorder %v604, %v632
    %vm640 = vcmp.eq.s32.totalorder %v607, %v632
    %vm641 = vcmp.eq.s32.totalorder %v610, %v632
    %vm642 = vcmp.eq.s32.totalorder %v613, %v632
    %vm643 = vcmp.eq.s32.totalorder %v616, %v632
    %vm644 = vcmp.eq.s32.totalorder %v619, %v632
    %vm645 = vcmp.eq.s32.totalorder %v622, %v632
    %vm646 = vcmp.eq.s32.totalorder %v625, %v632
    %vm647 = vcmp.eq.s32.totalorder %v628, %v632
    %vm648 = vcmp.eq.s32.totalorder %v631, %v632
    %649 = vset.pattern.permute.xlu0 4
    %650 = vperm.xlu0 %649, %v357
    %v651 = vpop.permute.xlu0 %650
    %652 = vset.pattern.permute.xlu0 4
    %653 = vperm.xlu0 %652, %v358
    %v654 = vpop.permute.xlu0 %653
    %655 = vset.pattern.permute.xlu0 4
    %656 = vperm.xlu0 %655, %v359
    %v657 = vpop.permute.xlu0 %656
    %658 = vset.pattern.permute.xlu0 4
    %659 = vperm.xlu0 %658, %v360
    %v660 = vpop.permute.xlu0 %659
    %661 = vset.pattern.permute.xlu0 4
    %662 = vperm.xlu0 %661, %v361
    %v663 = vpop.permute.xlu0 %662
    %664 = vset.pattern.permute.xlu0 4
    %665 = vperm.xlu0 %664, %v362
    %v666 = vpop.permute.xlu0 %665
    %667 = vset.pattern.permute.xlu0 4
    %668 = vperm.xlu0 %667, %v363
    %v669 = vpop.permute.xlu0 %668
    %670 = vset.pattern.permute.xlu0 4
    %671 = vperm.xlu0 %670, %v364
    %v672 = vpop.permute.xlu0 %671
    %673 = vset.pattern.permute.xlu0 4
    %674 = vperm.xlu0 %673, %v365
    %v675 = vpop.permute.xlu0 %674
    %676 = vset.pattern.permute.xlu0 4
    %677 = vperm.xlu0 %676, %v366
    %v678 = vpop.permute.xlu0 %677
    %679 = vset.pattern.permute.xlu0 4
    %680 = vperm.xlu0 %679, %v367
    %v681 = vpop.permute.xlu0 %680
    %682 = vset.pattern.permute.xlu0 4
    %683 = vperm.xlu0 %682, %v368
    %v684 = vpop.permute.xlu0 %683
    %685 = vset.pattern.permute.xlu0 4
    %686 = vperm.xlu0 %685, %v369
    %v687 = vpop.permute.xlu0 %686
    %688 = vset.pattern.permute.xlu0 4
    %689 = vperm.xlu0 %688, %v370
    %v690 = vpop.permute.xlu0 %689
    %691 = vset.pattern.permute.xlu0 4
    %692 = vperm.xlu0 %691, %v371
    %v693 = vpop.permute.xlu0 %692
    %694 = vset.pattern.permute.xlu0 4
    %695 = vperm.xlu0 %694, %v372
    %v696 = vpop.permute.xlu0 %695
    %v697 = vperm.slane %v192, 0
    %vm698 = vcmp.eq.s32.totalorder %v651, %v697
    %vm699 = vcmp.eq.s32.totalorder %v654, %v697
    %vm700 = vcmp.eq.s32.totalorder %v657, %v697
    %vm701 = vcmp.eq.s32.totalorder %v660, %v697
    %vm702 = vcmp.eq.s32.totalorder %v663, %v697
    %vm703 = vcmp.eq.s32.totalorder %v666, %v697
    %vm704 = vcmp.eq.s32.totalorder %v669, %v697
    %vm705 = vcmp.eq.s32.totalorder %v672, %v697
    %vm706 = vcmp.eq.s32.totalorder %v675, %v697
    %vm707 = vcmp.eq.s32.totalorder %v678, %v697
    %vm708 = vcmp.eq.s32.totalorder %v681, %v697
    %vm709 = vcmp.eq.s32.totalorder %v684, %v697
    %vm710 = vcmp.eq.s32.totalorder %v687, %v697
    %vm711 = vcmp.eq.s32.totalorder %v690, %v697
    %vm712 = vcmp.eq.s32.totalorder %v693, %v697
    %vm713 = vcmp.eq.s32.totalorder %v696, %v697
    %vm714 = vmand %vm633, %vm698
    %vm715 = vmand %vm634, %vm699
    %vm716 = vmand %vm635, %vm700
    %vm717 = vmand %vm636, %vm701
    %vm718 = vmand %vm637, %vm702
    %vm719 = vmand %vm638, %vm703
    %vm720 = vmand %vm639, %vm704
    %vm721 = vmand %vm640, %vm705
    %vm722 = vmand %vm641, %vm706
    %vm723 = vmand %vm642, %vm707
    %vm724 = vmand %vm643, %vm708
    %vm725 = vmand %vm644, %vm709
    %vm726 = vmand %vm645, %vm710
    %vm727 = vmand %vm646, %vm711
    %vm728 = vmand %vm647, %vm712
    %vm729 = vmand %vm648, %vm713
    %vm730 = vmor %vm568, %vm714
    %vm731 = vmor %vm569, %vm715
    %vm732 = vmor %vm570, %vm716
    %vm733 = vmor %vm571, %vm717
    %vm734 = vmor %vm572, %vm718
    %vm735 = vmor %vm573, %vm719
    %vm736 = vmor %vm574, %vm720
    %vm737 = vmor %vm575, %vm721
    %vm738 = vmor %vm576, %vm722
    %vm739 = vmor %vm577, %vm723
    %vm740 = vmor %vm578, %vm724
    %vm741 = vmor %vm579, %vm725
    %vm742 = vmor %vm580, %vm726
    %vm743 = vmor %vm581, %vm727
    %vm744 = vmor %vm582, %vm728
    %vm745 = vmor %vm583, %vm729
    %vm746 = vmand %vm730, %vm422
    %vm747 = vmand %vm731, %vm423
    %vm748 = vmand %vm732, %vm424
    %vm749 = vmand %vm733, %vm425
    %vm750 = vmand %vm734, %vm426
    %vm751 = vmand %vm735, %vm427
    %vm752 = vmand %vm736, %vm428
    %vm753 = vmand %vm737, %vm429
    %vm754 = vmand %vm738, %vm430
    %vm755 = vmand %vm739, %vm431
    %vm756 = vmand %vm740, %vm432
    %vm757 = vmand %vm741, %vm433
    %vm758 = vmand %vm742, %vm434
    %vm759 = vmand %vm743, %vm435
    %vm760 = vmand %vm744, %vm436
    %vm761 = vmand %vm745, %vm437
    %v762 = vsel %vm746, 1.0, 0.0
    %v763 = vsel %vm747, 1.0, 0.0
    %v764 = vsel %vm748, 1.0, 0.0
    %v765 = vsel %vm749, 1.0, 0.0
    %v766 = vsel %vm750, 1.0, 0.0
    %v767 = vsel %vm751, 1.0, 0.0
    %v768 = vsel %vm752, 1.0, 0.0
    %v769 = vsel %vm753, 1.0, 0.0
    %v770 = vsel %vm754, 1.0, 0.0
    %v771 = vsel %vm755, 1.0, 0.0
    %v772 = vsel %vm756, 1.0, 0.0
    %v773 = vsel %vm757, 1.0, 0.0
    %v774 = vsel %vm758, 1.0, 0.0
    %v775 = vsel %vm759, 1.0, 0.0
    %v776 = vsel %vm760, 1.0, 0.0
    %v777 = vsel %vm761, 1.0, 0.0
    %v778 = vmax.f32 %v762, %v766
    %v779 = vmax.f32 %v763, %v767
    %v780 = vmax.f32 %v764, %v768
    %v781 = vmax.f32 %v765, %v769
    %v782 = vmax.f32 %v778, %v770
    %v783 = vmax.f32 %v779, %v771
    %v784 = vmax.f32 %v780, %v772
    %v785 = vmax.f32 %v781, %v773
    %v786 = vmax.f32 %v782, %v774
    %v787 = vmax.f32 %v783, %v775
    %v788 = vmax.f32 %v784, %v776
    %v789 = vmax.f32 %v785, %v777
    %v790 = vmax.f32 %v786, %v787
    %v791 = vmax.f32 %v788, %v789
    %v792 = vmax.f32 %v790, %v791
    %v793 = vrot.slane %v792, 4
    %v794 = vmax.f32 %v792, %v793
    %v795 = vrot.slane %v794, 2
    %v796 = vmax.f32 %v794, %v795
    %v797 = vrot.slane %v796, 1
    %v798 = vmax.f32 %v796, %v797
    %vm799 = vcmp.gt.f32.partialorder %v798, 0.0
    %p800 = scmp.eq.s32.totalorder 0, 0
    // Predicated region
    $region26: #{tpu_custom_call.1} parent=1 // pred_check
      %p801 = pneg %p800
    $region27: #{tpu_custom_call.1} parent=1 // pred_check_branch
      %803 = sbr.rel (%p801) target = $region29
    $region28: #{tpu_custom_call.1} parent=1 // pred_region
      %804 = vst [vmem:[#allocation8] sm:$0x1] 0
    $region29: #{tpu_custom_call.1} parent=1 // pred_fallthru
      _
    %v805 = vld [vmem:[#allocation8] sm:$0x1]
    %v806 = vsel %vm799, 1, 0
    %v807 = vor.u32 %v805, %v806
    %808 = vst [vmem:[#allocation8] sm:$0x1] %v807
    // Predicated region
    $region30: #{tpu_custom_call.1} parent=1 // pred_check
      %p809 = pneg %p800
    $region31: #{tpu_custom_call.1} parent=1 // pred_check_branch
      %811 = sbr.rel (%p809) target = $region33
    $region32: #{tpu_custom_call.1} parent=1 // pred_region
      %v812 = vld [vmem:[#allocation8] sm:$0x1]
      %v813 = vsub.s32 1, %v812
      %814 = vst [vmem:[#allocation8] sm:$0x1] %v813
    $region33: #{tpu_custom_call.1} parent=1 // pred_fallthru
      _
    // Predicated region
    $region34: #{tpu_custom_call.1} parent=1 // pred_check
      _
    $region35: #{tpu_custom_call.1} parent=1 // pred_check_branch
      %816 = sbr.rel (0) target = $region37
    $region36: #{tpu_custom_call.1} parent=1 // pred_region
      %818 = vsyncadd [#allocation5], 0
      %s820 = sshll.u32 [#allocation8], 4
      %s821 = int_to_ptr.vmem [resolvable:$true] %s820
      %s822 = sshll.u32 %s4, 4
      %s823 = int_to_ptr.hbm [resolvable:$true] %s822
      %825 = dma.vmem_to_hbm [thread:$0]  %s821, 16, %s823, [#allocation5]
    $region37: #{tpu_custom_call.1} parent=1 // pred_fallthru
      _
    // Predicated region
    $region38: #{tpu_custom_call.1} parent=1 // pred_check
      _
    $region39: #{tpu_custom_call.1} parent=1 // pred_check_branch
      %827 = sbr.rel (0) target = $region41
    $region40: #{tpu_custom_call.1} parent=1 // pred_region
      %829 = dma.done [#allocation5], 16
    $region41: #{tpu_custom_call.1} parent=1 // pred_fallthru
      _
    %830 = vsyncpa [#allocation4], 1
    %831 = vsyncpa [#allocation7], 1
    %832 = vsyncpa [#allocation5], 1

</llo_original>
